<compile_context>
chip_gen: v5e
topology: v5e:2x2
jax: 0.10.0
libtpu: 0.0.40
codegen_flags: <defaults>
</compile_context>

<pallas_src>
import jax
import jax.numpy as jnp
from jax.experimental import pallas as pl
from jax.experimental.pallas import tpu as pltpu

_LANE = 128  # TPU vreg lane width; pad fused output to a multiple of this


def _twinned_q_fused_kernel(x_ref, w_ref, b_ref, o_ref):
    # x: [TB, 512], w: [512, Wp], b: [1, Wp] -> o: [TB, Wp]   (Wp = padded 2A)
    o_ref[...] = (
        jnp.dot(x_ref[...], w_ref[...], preferred_element_type=jnp.float32)
        + b_ref[...]
    ).astype(o_ref.dtype)


def pack_twinned_q_params(w1, b1, w2, b2):
    """Pack the two heads into one lane-dense weight/bias.  Call ONCE at setup.

    w1, w2: [K, A] (already transposed vs. torch's [A, K]); b1, b2: [A].
    Returns w_packed [K, Wp], b_packed [1, Wp] with Wp = 2A rounded up to 128.
    Columns [0:A] hold head 1, [A:2A] hold head 2, the rest are zeros.
    """
    K, A = w1.shape
    wp = ((2 * A + _LANE - 1) // _LANE) * _LANE
    w_packed = jnp.zeros((K, wp), w1.dtype)
    w_packed = w_packed.at[:, :A].set(w1).at[:, A:2 * A].set(w2)
    b_packed = jnp.zeros((1, wp), b1.dtype)
    b_packed = b_packed.at[0, :A].set(b1).at[0, A:2 * A].set(b2)
    return w_packed, b_packed


def twinned_q_forward(states, w_packed, b_packed, num_actions, *, batch_tile=256):
    """states: [B, 512]; w_packed: [512, Wp]; b_packed: [1, Wp].

    Returns (q1, q2), each [B, num_actions] — identical math to
    torch: q_i = states @ W_i.T + b_i.
    """
    B, K = states.shape
    Wp = w_packed.shape[1]
    A = num_actions
    itemsize = jnp.dtype(states.dtype).itemsize

    cost = pl.CostEstimate(
        flops=2 * B * K * (2 * A),
        transcendentals=0,
        bytes_accessed=(states.size + w_packed.size + b_packed.size + B * Wp) * itemsize,
    )

    out_shape = jax.ShapeDtypeStruct((B, Wp), states.dtype)
    use_grid = (B >= 2 * batch_tile) and (B % batch_tile == 0)

    if use_grid:
        # Batch-tiled path: rows sharded across TensorCores on v7x ("parallel"),
        # weights/bias pinned (same block every step) so they stay VMEM-resident.
        grid_spec = pltpu.PrefetchScalarGridSpec(
            num_scalar_prefetch=0,
            grid=(B // batch_tile,),
            in_specs=[
                pl.BlockSpec((batch_tile, K), lambda i: (i, 0)),  # states tile
                pl.BlockSpec((K, Wp), lambda i: (0, 0)),          # fused weight
                pl.BlockSpec((1, Wp), lambda i: (0, 0)),          # fused bias
            ],
            out_specs=pl.BlockSpec((batch_tile, Wp), lambda i: (i, 0)),
        )
        out = pl.pallas_call(
            _twinned_q_fused_kernel,
            out_shape=out_shape,
            grid_spec=grid_spec,
            compiler_params=pltpu.CompilerParams(
                dimension_semantics=("parallel",)
            ),
            cost_estimate=cost,
        )(states, w_packed, b_packed)
    else:
        # Small batch: single gridless invocation (no per-step grid overhead).
        vmem = pltpu.MemorySpace.VMEM
        out = pl.pallas_call(
            _twinned_q_fused_kernel,
            out_shape=out_shape,
            in_specs=[
                pl.BlockSpec(memory_space=vmem),
                pl.BlockSpec(memory_space=vmem),
                pl.BlockSpec(memory_space=vmem),
            ],
            out_specs=pl.BlockSpec(memory_space=vmem),
            cost_estimate=cost,
        )(states, w_packed, b_packed)

    q1 = out[:, :A]
    q2 = out[:, A:2 * A]
    return q1, q2


def init_twinned_q_params(key, in_features=512, num_actions=4, dtype=jnp.float32):
    """Deterministic init mirroring torch.nn.Linear default (U[-1/sqrt(K), 1/sqrt(K)])."""
    k1, k2, k3, k4 = jax.random.split(key, 4)
    bound = 1.0 / jnp.sqrt(jnp.float32(in_features))
    # stored already transposed: [in_features, num_actions]
    w1 = jax.random.uniform(k1, (in_features, num_actions), dtype, -bound, bound)
    b1 = jax.random.uniform(k2, (num_actions,), dtype, -bound, bound)
    w2 = jax.random.uniform(k3, (in_features, num_actions), dtype, -bound, bound)
    b2 = jax.random.uniform(k4, (num_actions,), dtype, -bound, bound)
    return w1, b1, w2, b2


if __name__ == "__main__":
    key = jax.random.PRNGKey(0)
    k_x, k_p, k_x2 = jax.random.split(key, 3)

    B, K, A = 2, 512, 4  # batch=2, feature dim fixed at 512 by the module, num_actions=4
    states = jax.random.normal(k_x, (B, K), jnp.float32)
    w1, b1, w2, b2 = init_twinned_q_params(k_p, in_features=K, num_actions=A)

    # One-time packing (NOT on the per-call hot path).
    w_packed, b_packed = pack_twinned_q_params(w1, b1, w2, b2)

    # Small-batch (gridless) path.
    q1, q2 = twinned_q_forward(states, w_packed, b_packed, A)
    jax.block_until_ready((q1, q2))

    q1_ref = states @ w1 + b1
    q2_ref = states @ w2 + b2
    assert q1.shape == (B, A) and q2.shape == (B, A)
    assert jnp.allclose(q1, q1_ref, atol=1e-5), "Q1 mismatch"
    assert jnp.allclose(q2, q2_ref, atol=1e-5), "Q2 mismatch"

    # Larger batch exercises the batch-tiled ("parallel" grid) path.
    B2 = 512
    states2 = jax.random.normal(k_x2, (B2, K), jnp.float32)
    q1b, q2b = twinned_q_forward(states2, w_packed, b_packed, A)
    jax.block_until_ready((q1b, q2b))
    assert jnp.allclose(q1b, states2 @ w1 + b1, atol=2e-4), "Q1 mismatch (tiled)"
    assert jnp.allclose(q2b, states2 @ w2 + b2, atol=2e-4), "Q2 mismatch (tiled)"

    print("KERNEL_OK")
</pallas_src>

<mosaic_0001>
module attributes {stable_mosaic.version = 11 : i64} {
  func.func @_twinned_q_fused_kernel(%arg0: memref<2x512xf32, #tpu.memory_space<vmem>>, %arg1: memref<512x128xf32, #tpu.memory_space<vmem>>, %arg2: memref<1x128xf32, #tpu.memory_space<vmem>>, %arg3: memref<2x128xf32, #tpu.memory_space<vmem>>) attributes {dimension_semantics = [], scalar_prefetch = 0 : i64, scratch_operands = 0 : i64, tpu.core_type = #tpu.core_type<tc>} {
    %c0 = arith.constant 0 : index
    %c0_0 = arith.constant 0 : index
    %0 = vector.load %arg0[%c0, %c0_0] : memref<2x512xf32, #tpu.memory_space<vmem>>, vector<2x512xf32>
    %c0_1 = arith.constant 0 : index
    %c0_2 = arith.constant 0 : index
    %1 = vector.load %arg1[%c0_1, %c0_2] : memref<512x128xf32, #tpu.memory_space<vmem>>, vector<512x128xf32>
    %cst = arith.constant dense<0.000000e+00> : vector<2x128xf32>
    %2 = tpu.matmul %0, %1, %cst {dimension_numbers = #tpu.dot_dimension_numbers<[1], [0], [0], [1], [0, 0, 1, 1], [], []>} : vector<2x512xf32>, vector<512x128xf32>, vector<2x128xf32> -> vector<2x128xf32>
    %c0_3 = arith.constant 0 : index
    %c0_4 = arith.constant 0 : index
    %3 = vector.load %arg2[%c0_3, %c0_4] : memref<1x128xf32, #tpu.memory_space<vmem>>, vector<1x128xf32>
    %4 = vector.broadcast %3 : vector<1x128xf32> to vector<2x128xf32>
    %5 = arith.addf %2, %4 : vector<2x128xf32>
    %c0_5 = arith.constant 0 : index
    %c0_6 = arith.constant 0 : index
    %6 = vector.load %arg3[%c0_5, %c0_6] : memref<2x128xf32, #tpu.memory_space<vmem>>, vector<2x128xf32>
    tpu.vector_store %arg3[%c0_5, %c0_6], %5 {strides = array<i32>} : memref<2x128xf32, #tpu.memory_space<vmem>>, vector<2x128xf32>,
    return
  }
}

</mosaic_0001>

<llo_original>
// kernel: tpu_custom_call.1
$region0: #{tpu_custom_call.1}
  #allocation0 [shape = 'u32[]', space=smem, size = 0x4, offset = 0x4, fixed_abs, tag = 'smem constant byte address 0x4 - core index']
  #allocation1 [shape = 'u32[72,128]{1,0:T(1,128)}', space=vmem, size = 0x9000, scoped, tag = 'internal scratch']
  %s0 = inlined_call_operand.hbm [shape: f32[2,512], index: 0, kind: input, shape index: {}]
  %s1 = inlined_call_operand.hbm [shape: f32[512,128], index: 1, kind: input, shape index: {}]
  %s2 = inlined_call_operand.vmem [shape: f32[1,128], index: 2, kind: input, shape index: {}]
  %s3 = inlined_call_operand.hbm [shape: f32[2,128], index: 3, kind: output, shape index: {}]
  %s4 = sld [smem:[#allocation0]]
  $region30: #{tpu_custom_call.1} parent=0
    _
  %s6 = ssub.s32 1, %s4
  %s7 = scalar_select 0, %s6, %s4
  $region1: #{tpu_custom_call.1} parent=0
    #allocation2 [shape = 'u8[4096]{0}', space=vmem, size = 0x1000, scoped, tag = 'input window, operand 0, single buffered']
    #allocation3 [shape = 's32[1]{0}', space=sflag, size = 0x4, scoped, tag = 'scoped memory for tpu_custom_call.1']
    #allocation4 [shape = 's32[1]{0}', space=sflag, size = 0x4, scoped, tag = 'scoped memory for tpu_custom_call.1']
    #allocation5 [shape = 'u8[262144]{0}', space=vmem, size = 0x40000, scoped, tag = 'input window, operand 1, single buffered']
    #allocation6 [shape = 's32[1]{0}', space=sflag, size = 0x4, scoped, tag = 'scoped memory for tpu_custom_call.1']
    #allocation7 [shape = 'u8[1024]{0}', space=vmem, size = 0x400, scoped, tag = 'output window, operand 0, single buffered']
    %8 = vsyncpa [#allocation3], 0
    %9 = vsyncpa [#allocation6], 0
    %10 = vsyncpa [#allocation4], 0
    // Predicated region
    $region2: #{tpu_custom_call.1} parent=1 // pred_check
      _
    $region3: #{tpu_custom_call.1} parent=1 // pred_check_branch
      %12 = sbr.rel (0) target = $region5
    $region4: #{tpu_custom_call.1} parent=1 // pred_region
      %14 = vsyncadd [#allocation3], 0
      %s16 = sshll.u32 %s0, 4
      %s17 = int_to_ptr.hbm [resolvable:$true] %s16
      %s18 = sshll.u32 [#allocation2], 4
      %s19 = int_to_ptr.vmem [resolvable:$true] %s18
      %21 = dma.hbm_to_vmem [thread:$0]  %s17, 128, %s19, [#allocation3]
    $region5: #{tpu_custom_call.1} parent=1 // pred_fallthru
      _
    // Predicated region
    $region6: #{tpu_custom_call.1} parent=1 // pred_check
      _
    $region7: #{tpu_custom_call.1} parent=1 // pred_check_branch
      %23 = sbr.rel (0) target = $region9
    $region8: #{tpu_custom_call.1} parent=1 // pred_region
      %25 = vsyncadd [#allocation6], 0
      %s26 = sshll.u32 %s1, 4
      %s27 = int_to_ptr.hbm [resolvable:$true] %s26
      %s28 = sshll.u32 [#allocation5], 4
      %s29 = int_to_ptr.vmem [resolvable:$true] %s28
      %34 = dma.hbm_to_vmem [thread:$0]  %s27, 8192, %s29, [#allocation6], 128, 128, 8
    $region9: #{tpu_custom_call.1} parent=1 // pred_fallthru
      _
    // Predicated region
    $region10: #{tpu_custom_call.1} parent=1 // pred_check
      _
    $region11: #{tpu_custom_call.1} parent=1 // pred_check_branch
      %36 = sbr.rel (0) target = $region13
    $region12: #{tpu_custom_call.1} parent=1 // pred_region
      _
    $region13: #{tpu_custom_call.1} parent=1 // pred_fallthru
      _
    // Predicated region
    $region14: #{tpu_custom_call.1} parent=1 // pred_check
      _
    $region15: #{tpu_custom_call.1} parent=1 // pred_check_branch
      %38 = sbr.rel (0) target = $region17
    $region16: #{tpu_custom_call.1} parent=1 // pred_region
      %40 = dma.done [#allocation3], 128
    $region17: #{tpu_custom_call.1} parent=1 // pred_fallthru
      _
    // Predicated region
    $region18: #{tpu_custom_call.1} parent=1 // pred_check
      _
    $region19: #{tpu_custom_call.1} parent=1 // pred_check_branch
      %42 = sbr.rel (0) target = $region21
    $region20: #{tpu_custom_call.1} parent=1 // pred_region
      %44 = dma.done [#allocation6], 8192
    $region21: #{tpu_custom_call.1} parent=1 // pred_fallthru
      _
    %v45 = vld [vmem:[#allocation2] sm:$0xff]
    %v46 = vld [vmem:[#allocation5] sm:$0xff]
    %v47 = vld [vmem:[#allocation5 + $0x8] sm:$0xff]
    %v48 = vld [vmem:[#allocation5 + $0x10] sm:$0xff]
    %v49 = vld [vmem:[#allocation5 + $0x18] sm:$0xff]
    %v50 = vld [vmem:[#allocation5 + $0x20] sm:$0xff]
    %v51 = vld [vmem:[#allocation5 + $0x28] sm:$0xff]
    %v52 = vld [vmem:[#allocation5 + $0x30] sm:$0xff]
    %v53 = vld [vmem:[#allocation5 + $0x38] sm:$0xff]
    %v54 = vld [vmem:[#allocation5 + $0x40] sm:$0xff]
    %v55 = vld [vmem:[#allocation5 + $0x48] sm:$0xff]
    %v56 = vld [vmem:[#allocation5 + $0x50] sm:$0xff]
    %v57 = vld [vmem:[#allocation5 + $0x58] sm:$0xff]
    %v58 = vld [vmem:[#allocation5 + $0x60] sm:$0xff]
    %v59 = vld [vmem:[#allocation5 + $0x68] sm:$0xff]
    %v60 = vld [vmem:[#allocation5 + $0x70] sm:$0xff]
    %v61 = vld [vmem:[#allocation5 + $0x78] sm:$0xff]
    %v62 = vld [vmem:[#allocation5 + $0x80] sm:$0xff]
    %v63 = vld [vmem:[#allocation5 + $0x88] sm:$0xff]
    %v64 = vld [vmem:[#allocation5 + $0x90] sm:$0xff]
    %v65 = vld [vmem:[#allocation5 + $0x98] sm:$0xff]
    %v66 = vld [vmem:[#allocation5 + $0xa0] sm:$0xff]
    %v67 = vld [vmem:[#allocation5 + $0xa8] sm:$0xff]
    %v68 = vld [vmem:[#allocation5 + $0xb0] sm:$0xff]
    %v69 = vld [vmem:[#allocation5 + $0xb8] sm:$0xff]
    %v70 = vld [vmem:[#allocation5 + $0xc0] sm:$0xff]
    %v71 = vld [vmem:[#allocation5 + $0xc8] sm:$0xff]
    %v72 = vld [vmem:[#allocation5 + $0xd0] sm:$0xff]
    %v73 = vld [vmem:[#allocation5 + $0xd8] sm:$0xff]
    %v74 = vld [vmem:[#allocation5 + $0xe0] sm:$0xff]
    %v75 = vld [vmem:[#allocation5 + $0xe8] sm:$0xff]
    %v76 = vld [vmem:[#allocation5 + $0xf0] sm:$0xff]
    %v77 = vld [vmem:[#allocation5 + $0xf8] sm:$0xff]
    %v78 = vld [vmem:[#allocation5 + $0x100] sm:$0xff]
    %v79 = vld [vmem:[#allocation5 + $0x108] sm:$0xff]
    %v80 = vld [vmem:[#allocation5 + $0x110] sm:$0xff]
    %v81 = vld [vmem:[#allocation5 + $0x118] sm:$0xff]
    %v82 = vld [vmem:[#allocation5 + $0x120] sm:$0xff]
    %v83 = vld [vmem:[#allocation5 + $0x128] sm:$0xff]
    %v84 = vld [vmem:[#allocation5 + $0x130] sm:$0xff]
    %v85 = vld [vmem:[#allocation5 + $0x138] sm:$0xff]
    %v86 = vld [vmem:[#allocation5 + $0x140] sm:$0xff]
    %v87 = vld [vmem:[#allocation5 + $0x148] sm:$0xff]
    %v88 = vld [vmem:[#allocation5 + $0x150] sm:$0xff]
    %v89 = vld [vmem:[#allocation5 + $0x158] sm:$0xff]
    %v90 = vld [vmem:[#allocation5 + $0x160] sm:$0xff]
    %v91 = vld [vmem:[#allocation5 + $0x168] sm:$0xff]
    %v92 = vld [vmem:[#allocation5 + $0x170] sm:$0xff]
    %v93 = vld [vmem:[#allocation5 + $0x178] sm:$0xff]
    %v94 = vld [vmem:[#allocation5 + $0x180] sm:$0xff]
    %v95 = vld [vmem:[#allocation5 + $0x188] sm:$0xff]
    %v96 = vld [vmem:[#allocation5 + $0x190] sm:$0xff]
    %v97 = vld [vmem:[#allocation5 + $0x198] sm:$0xff]
    %v98 = vld [vmem:[#allocation5 + $0x1a0] sm:$0xff]
    %v99 = vld [vmem:[#allocation5 + $0x1a8] sm:$0xff]
    %v100 = vld [vmem:[#allocation5 + $0x1b0] sm:$0xff]
    %v101 = vld [vmem:[#allocation5 + $0x1b8] sm:$0xff]
    %v102 = vld [vmem:[#allocation5 + $0x1c0] sm:$0xff]
    %v103 = vld [vmem:[#allocation5 + $0x1c8] sm:$0xff]
    %v104 = vld [vmem:[#allocation5 + $0x1d0] sm:$0xff]
    %v105 = vld [vmem:[#allocation5 + $0x1d8] sm:$0xff]
    %v106 = vld [vmem:[#allocation5 + $0x1e0] sm:$0xff]
    %v107 = vld [vmem:[#allocation5 + $0x1e8] sm:$0xff]
    %v108 = vld [vmem:[#allocation5 + $0x1f0] sm:$0xff]
    %v109 = vld [vmem:[#allocation5 + $0x1f8] sm:$0xff]
    %v110 = vld [vmem:[%s2] sm:$0x1]
    %v112 = vperm.slane %v110, 0
    %115 = vst [vmem:[#allocation1] ss:$4 sm:$0xff] %v45
    %v116 = vld.sshfl [vmem:[#allocation1] sm:$0xff pattern:$0x73625140]
    %v117 = vld.sshfl [vmem:[#allocation1 + $0x8] sm:$0xff pattern:$0x73625140]
    %v118 = vld.sshfl [vmem:[#allocation1 + $0x10] sm:$0xff pattern:$0x73625140]
    %v119 = vld.sshfl [vmem:[#allocation1 + $0x18] sm:$0xff pattern:$0x73625140]
    %124 = vmatpush.msra.mxu0 %v61
    %125 = vmatpush.msra.mxu0 %v60
    %126 = vmatpush.msra.mxu0 %v59
    %127 = vmatpush.msra.mxu0 %v58
    %128 = vmatpush.msra.mxu0 %v57
    %129 = vmatpush.msra.mxu0 %v56
    %130 = vmatpush.msra.mxu0 %v55
    %131 = vmatpush.msra.mxu0 %v54
    %132 = vmatpush.msra.mxu0 %v53
    %133 = vmatpush.msra.mxu0 %v52
    %134 = vmatpush.msra.mxu0 %v51
    %135 = vmatpush.msra.mxu0 %v50
    %136 = vmatpush.msra.mxu0 %v49
    %137 = vmatpush.msra.mxu0 %v48
    %138 = vmatpush.msra.mxu0 %v47
    %139 = vmatpush.msra.mxu0 %v46
    %140 = vmatmul.f32.gmra.mxu0 %v116
    %v141 = vpop.f32.mrf.mxu0
    %v142 = vadd.f32 %v112, %v141
    %143 = vdwg.mxu0
    %144 = vmatpush.msra.mxu0 %v77
    %145 = vmatpush.msra.mxu0 %v76
    %146 = vmatpush.msra.mxu0 %v75
    %147 = vmatpush.msra.mxu0 %v74
    %148 = vmatpush.msra.mxu0 %v73
    %149 = vmatpush.msra.mxu0 %v72
    %150 = vmatpush.msra.mxu0 %v71
    %151 = vmatpush.msra.mxu0 %v70
    %152 = vmatpush.msra.mxu0 %v69
    %153 = vmatpush.msra.mxu0 %v68
    %154 = vmatpush.msra.mxu0 %v67
    %155 = vmatpush.msra.mxu0 %v66
    %156 = vmatpush.msra.mxu0 %v65
    %157 = vmatpush.msra.mxu0 %v64
    %158 = vmatpush.msra.mxu0 %v63
    %159 = vmatpush.msra.mxu0 %v62
    %160 = vmatmul.f32.gmra.mxu0 %v117
    %v161 = vpop.f32.mrf.mxu0
    %v162 = vadd.f32 %v142, %v161
    %163 = vdwg.mxu0
    %164 = vmatpush.msra.mxu0 %v93
    %165 = vmatpush.msra.mxu0 %v92
    %166 = vmatpush.msra.mxu0 %v91
    %167 = vmatpush.msra.mxu0 %v90
    %168 = vmatpush.msra.mxu0 %v89
    %169 = vmatpush.msra.mxu0 %v88
    %170 = vmatpush.msra.mxu0 %v87
    %171 = vmatpush.msra.mxu0 %v86
    %172 = vmatpush.msra.mxu0 %v85
    %173 = vmatpush.msra.mxu0 %v84
    %174 = vmatpush.msra.mxu0 %v83
    %175 = vmatpush.msra.mxu0 %v82
    %176 = vmatpush.msra.mxu0 %v81
    %177 = vmatpush.msra.mxu0 %v80
    %178 = vmatpush.msra.mxu0 %v79
    %179 = vmatpush.msra.mxu0 %v78
    %180 = vmatmul.f32.gmra.mxu0 %v118
    %v181 = vpop.f32.mrf.mxu0
    %v182 = vadd.f32 %v162, %v181
    %183 = vdwg.mxu0
    %184 = vmatpush.msra.mxu0 %v109
    %185 = vmatpush.msra.mxu0 %v108
    %186 = vmatpush.msra.mxu0 %v107
    %187 = vmatpush.msra.mxu0 %v106
    %188 = vmatpush.msra.mxu0 %v105
    %189 = vmatpush.msra.mxu0 %v104
    %190 = vmatpush.msra.mxu0 %v103
    %191 = vmatpush.msra.mxu0 %v102
    %192 = vmatpush.msra.mxu0 %v101
    %193 = vmatpush.msra.mxu0 %v100
    %194 = vmatpush.msra.mxu0 %v99
    %195 = vmatpush.msra.mxu0 %v98
    %196 = vmatpush.msra.mxu0 %v97
    %197 = vmatpush.msra.mxu0 %v96
    %198 = vmatpush.msra.mxu0 %v95
    %199 = vmatpush.msra.mxu0 %v94
    %200 = vmatmul.f32.gmra.mxu0 %v119
    %v201 = vpop.f32.mrf.mxu0
    %v202 = vadd.f32 %v182, %v201
    %203 = vdwg.mxu0
    %204 = vst [vmem:[#allocation7] sm:$0x3] %v202
    // Predicated region
    $region22: #{tpu_custom_call.1} parent=1 // pred_check
      _
    $region23: #{tpu_custom_call.1} parent=1 // pred_check_branch
      %206 = sbr.rel (0) target = $region25
    $region24: #{tpu_custom_call.1} parent=1 // pred_region
      %208 = vsyncadd [#allocation4], 0
      %s210 = sshll.u32 [#allocation7], 4
      %s211 = int_to_ptr.vmem [resolvable:$true] %s210
      %s212 = sshll.u32 %s3, 4
      %s213 = int_to_ptr.hbm [resolvable:$true] %s212
      %215 = dma.vmem_to_hbm [thread:$0]  %s211, 32, %s213, [#allocation4]
    $region25: #{tpu_custom_call.1} parent=1 // pred_fallthru
      _
    // Predicated region
    $region26: #{tpu_custom_call.1} parent=1 // pred_check
      _
    $region27: #{tpu_custom_call.1} parent=1 // pred_check_branch
      %217 = sbr.rel (0) target = $region29
    $region28: #{tpu_custom_call.1} parent=1 // pred_region
      %219 = dma.done [#allocation4], 32
    $region29: #{tpu_custom_call.1} parent=1 // pred_fallthru
      _
    %220 = vsyncpa [#allocation3], 1
    %221 = vsyncpa [#allocation6], 1
    %222 = vsyncpa [#allocation4], 1

</llo_original>
